<compile_context>
chip_gen: v6e
topology: v6e:2x2x1
jax: 0.10.0
libtpu: 0.0.40
codegen_flags: <defaults>
</compile_context>

<pallas_src>
import jax
import jax.numpy as jnp
from jax.experimental import pallas as pl
from jax.experimental.pallas import tpu as pltpu


# ----------------------------------------------------------------------------
# Fused kernel: pointwise-conv(+ReLU) -> avg-pool (MXU) -> Linear -> BatchNorm
# ----------------------------------------------------------------------------
def _encoder_kernel(x_ref, ws_ref, pool_ref, wfc_ref, gb_ref, o_ref, feat_ref):
    # x_ref   : (TR, C_in_pad)         bf16  row tile of the flattened images
    # ws_ref  : (C_in_pad, C_feat_pad) bf16  backbone stand-in weight
    # pool_ref: (N, TR)                bf16  block-diag avg-pool matrix chunk
    # wfc_ref : (C_feat_pad, E_pad)    bf16  fc weight
    # gb_ref  : (2, E_pad)             f32   rows = [bn gamma, bn beta]
    # o_ref   : (N, E_pad)             f32   lane-dense output (resident)
    # feat_ref: (N, C_feat_pad)        f32   pooled-feature accumulator scratch
    i = pl.program_id(0)

    @pl.when(i == 0)
    def _():
        feat_ref[...] = jnp.zeros_like(feat_ref)

    # Backbone stand-in: lane-/K-padded bf16 MXU matmul, f32 accumulate,
    # ReLU in f32 (v5e has no bf16 VPU path).
    h = jnp.maximum(
        jnp.dot(x_ref[...], ws_ref[...], preferred_element_type=jnp.float32),
        0.0)

    # AdaptiveAvgPool2d((1,1)) + reshape: block-diagonal pooling matmul on the
    # MXU, accumulated across row tiles in f32.  Tiles need not align with
    # image boundaries.
    feat_ref[...] += jnp.dot(pool_ref[...], h.astype(jnp.bfloat16),
                             preferred_element_type=jnp.float32)

    # Finalize on the last tile: Linear (bias dropped -- cancels exactly under
    # training-mode BN) + BatchNorm1d with batch statistics, lane-dense store.
    @pl.when(i == pl.num_programs(0) - 1)
    def _():
        gamma = gb_ref[0:1, :]
        beta = gb_ref[1:2, :]
        y = jnp.dot(feat_ref[...].astype(jnp.bfloat16), wfc_ref[...],
                    preferred_element_type=jnp.float32)
        mean = jnp.mean(y, axis=0, keepdims=True)
        var = jnp.mean((y - mean) ** 2, axis=0, keepdims=True)
        scale = gamma * jax.lax.rsqrt(var + 1e-5)   # gamma folded into rsqrt
        o_ref[...] = (y - mean) * scale + beta


# ----------------------------------------------------------------------------
# Wrapper
# ----------------------------------------------------------------------------
def _round_up(x, m):
    return ((x + m - 1) // m) * m


def encoder_cnn_forward(images, params, *, tile_rows=128):
    """EncoderCNN.forward: images (N, C, H, W) f32 -> embeddings (N, embed) f32."""
    n, c_in, h, w = images.shape
    s = h * w
    rows = n * s
    c_feat = params["w_stem"].shape[1]
    e = params["w_fc"].shape[1]

    c_in_pad = _round_up(c_in, 128)
    c_feat_pad = _round_up(c_feat, 128)
    e_pad = _round_up(e, 128)
    assert rows % tile_rows == 0 and tile_rows % 8 == 0
    num_tiles = rows // tile_rows

    # NCHW -> (N*S, C_in_pad) bf16, lane-dense / MXU-shaped K.
    # TODO(synk): at real sizes accept NHWC/bf16 activations from the producer
    # (or fold the layout change into the kernel via a transposed matmul) to
    # avoid this extra HBM read+write before the kernel.
    x2d = jnp.transpose(images, (0, 2, 3, 1)).reshape(rows, c_in)
    x2d = jnp.pad(x2d, ((0, 0), (0, c_in_pad - c_in))).astype(jnp.bfloat16)

    w_stem = jnp.pad(params["w_stem"],
                     ((0, c_in_pad - c_in), (0, c_feat_pad - c_feat))
                     ).astype(jnp.bfloat16)
    wfc = jnp.pad(params["w_fc"],
                  ((0, c_feat_pad - c_feat), (0, e_pad - e))).astype(jnp.bfloat16)

    # Block-diagonal average-pool matrix: pool[i, r] = 1/S iff global row r
    # belongs to image i.  1/S is a power of two here, so it is exact in bf16.
    row_img = jnp.arange(rows, dtype=jnp.int32) // s
    pool = ((row_img[None, :] == jnp.arange(n, dtype=jnp.int32)[:, None])
            .astype(jnp.float32) * (1.0 / s)).astype(jnp.bfloat16)

    pad_e = (0, e_pad - e)
    gb = jnp.stack([
        jnp.pad(params["bn_gamma"].astype(jnp.float32), pad_e),
        jnp.pad(params["bn_beta"].astype(jnp.float32), pad_e),
    ], axis=0)  # (2, E_pad): one packed VMEM block
    # NOTE: fc bias intentionally omitted (cancels under training-mode BN).

    out_pad = pl.pallas_call(
        _encoder_kernel,
        out_shape=jax.ShapeDtypeStruct((n, e_pad), jnp.float32),
        grid=(num_tiles,),
        in_specs=[
            pl.BlockSpec((tile_rows, c_in_pad), lambda i: (i, 0)),
            pl.BlockSpec((c_in_pad, c_feat_pad), lambda i: (0, 0)),
            pl.BlockSpec((n, tile_rows), lambda i: (0, i)),
            pl.BlockSpec((c_feat_pad, e_pad), lambda i: (0, 0)),
            pl.BlockSpec((2, e_pad), lambda i: (0, 0)),
        ],
        out_specs=pl.BlockSpec((n, e_pad), lambda i: (0, 0)),
        scratch_shapes=[pltpu.VMEM((n, c_feat_pad), jnp.float32)],
        compiler_params=pltpu.CompilerParams(
            dimension_semantics=("arbitrary",)),
        # TODO(synk): at real ResNet-152 sizes: raise vmem_limit_bytes and use
        # >=512-row tiles on v6e; budget tiles against 64 MiB VMEM on v7x
        # (~half the v6e tile) and split the row axis across its two
        # TensorCores with a cross-core BN-stat combine; respect v5e's 16 MiB
        # scoped default and 128-wide MXU; keep N-per-output-block >= 8.
    )(x2d, w_stem, pool, wfc, gb)

    return out_pad[:, :e]


# ----------------------------------------------------------------------------
# Main
# ----------------------------------------------------------------------------
if __name__ == "__main__":
    N, C_IN, H, W = 2, 4, 16, 16
    C_FEAT = 32
    EMBED = 8
    S = H * W

    key = jax.random.PRNGKey(0)
    k_img, k_stem, k_w, k_b = jax.random.split(key, 4)

    images = jax.random.normal(k_img, (N, C_IN, H, W), dtype=jnp.float32)
    params = {
        "w_stem": jax.random.normal(k_stem, (C_IN, C_FEAT), dtype=jnp.float32) * 0.1,
        "w_fc": jax.random.normal(k_w, (C_FEAT, EMBED), dtype=jnp.float32) * 0.1,
        "b_fc": jax.random.normal(k_b, (EMBED,), dtype=jnp.float32) * 0.01,
        "bn_gamma": jnp.ones((EMBED,), dtype=jnp.float32),
        "bn_beta": jnp.zeros((EMBED,), dtype=jnp.float32),
    }

    out = jax.jit(encoder_cnn_forward)(images, params)
    out = jax.block_until_ready(out)

    assert out.shape == (N, EMBED), out.shape
    assert out.dtype == jnp.float32

    # Plain-JAX reference with the same bf16-compute / f32-accumulate recipe.
    # It keeps the fc bias, demonstrating that dropping it in the kernel is
    # exact under training-mode BatchNorm.
    x2d = jnp.transpose(images, (0, 2, 3, 1)).reshape(N * S, C_IN).astype(jnp.bfloat16)
    h_ref = jnp.maximum(
        jnp.dot(x2d, params["w_stem"].astype(jnp.bfloat16),
                preferred_element_type=jnp.float32), 0.0)
    f_ref = (h_ref.astype(jnp.bfloat16).astype(jnp.float32)
             .reshape(N, S, C_FEAT).mean(axis=1))               # avg-pool
    y_ref = jnp.dot(f_ref.astype(jnp.bfloat16),
                    params["w_fc"].astype(jnp.bfloat16),
                    preferred_element_type=jnp.float32) + params["b_fc"]
    m_ref = jnp.mean(y_ref, axis=0, keepdims=True)
    v_ref = jnp.mean((y_ref - m_ref) ** 2, axis=0, keepdims=True)
    ref = (params["bn_gamma"] * (y_ref - m_ref) * jax.lax.rsqrt(v_ref + 1e-5)
           + params["bn_beta"])

    # Tolerance covers reduction-order / bf16 rounding differences between the
    # Mosaic kernel and the XLA reference; BN outputs are O(1).
    assert jnp.allclose(out, ref, atol=2e-2, rtol=2e-2), \
        float(jnp.max(jnp.abs(out - ref)))

    print("KERNEL_OK")
</pallas_src>

<mosaic_0001>
module attributes {stable_mosaic.version = 11 : i64} {
  func.func @_encoder_kernel(%arg0: i32, %arg1: memref<128x128xbf16, #tpu.memory_space<vmem>>, %arg2: memref<128x128xbf16, #tpu.memory_space<vmem>>, %arg3: memref<2x128xbf16, #tpu.memory_space<vmem>>, %arg4: memref<128x128xbf16, #tpu.memory_space<vmem>>, %arg5: memref<2x128xf32, #tpu.memory_space<vmem>>, %arg6: memref<2x128xf32, #tpu.memory_space<vmem>>, %arg7: memref<2x128xf32, #tpu.memory_space<vmem>>) attributes {dimension_semantics = [#tpu.dimension_semantics<arbitrary>], iteration_bounds = array<i64: 4>, scalar_prefetch = 0 : i64, scratch_operands = 1 : i64, tpu.core_type = #tpu.core_type<tc>, window_params = [{transform_indices = @transform_0, window_bounds = array<i64: 128, 128>}, {pipeline_mode = #tpu.pipeline_mode<synchronous>, transform_indices = @transform_1, window_bounds = array<i64: 128, 128>}, {transform_indices = @transform_2, window_bounds = array<i64: 2, 128>}, {pipeline_mode = #tpu.pipeline_mode<synchronous>, transform_indices = @transform_3, window_bounds = array<i64: 128, 128>}, {pipeline_mode = #tpu.pipeline_mode<synchronous>, transform_indices = @transform_4, window_bounds = array<i64: 2, 128>}, {pipeline_mode = #tpu.pipeline_mode<synchronous>, transform_indices = @transform_5, window_bounds = array<i64: 2, 128>}]} {
    %c0_i32 = arith.constant 0 : i32
    %0 = arith.cmpi eq, %arg0, %c0_i32 : i32
    %1 = arith.extui %0 : i1 to i32
    %c0_i32_0 = arith.constant 0 : i32
    %2 = arith.cmpi ne, %1, %c0_i32_0 : i32
    scf.if %2 {
      %cst_13 = arith.constant 0.000000e+00 : f32
      %17 = vector.broadcast %cst_13 : f32 to vector<2x128xf32>
      %c0_14 = arith.constant 0 : index
      %c0_15 = arith.constant 0 : index
      %18 = vector.load %arg7[%c0_14, %c0_15] : memref<2x128xf32, #tpu.memory_space<vmem>>, vector<2x128xf32>
      tpu.vector_store %arg7[%c0_14, %c0_15], %17 {strides = array<i32>} : memref<2x128xf32, #tpu.memory_space<vmem>>, vector<2x128xf32>,
    } else {
    }
    %c0 = arith.constant 0 : index
    %c0_1 = arith.constant 0 : index
    %3 = vector.load %arg1[%c0, %c0_1] : memref<128x128xbf16, #tpu.memory_space<vmem>>, vector<128x128xbf16>
    %c0_2 = arith.constant 0 : index
    %c0_3 = arith.constant 0 : index
    %4 = vector.load %arg2[%c0_2, %c0_3] : memref<128x128xbf16, #tpu.memory_space<vmem>>, vector<128x128xbf16>
    %cst = arith.constant dense<0.000000e+00> : vector<128x128xf32>
    %5 = tpu.matmul %3, %4, %cst {dimension_numbers = #tpu.dot_dimension_numbers<[1], [0], [0], [1], [0, 0, 1, 1], [], []>} : vector<128x128xbf16>, vector<128x128xbf16>, vector<128x128xf32> -> vector<128x128xf32>
    %cst_4 = arith.constant 0.000000e+00 : f32
    %6 = vector.broadcast %cst_4 : f32 to vector<128x128xf32>
    %7 = arith.maximumf %5, %6 : vector<128x128xf32>
    %c0_5 = arith.constant 0 : index
    %c0_6 = arith.constant 0 : index
    %8 = vector.load %arg7[%c0_5, %c0_6] : memref<2x128xf32, #tpu.memory_space<vmem>>, vector<2x128xf32>
    %c0_7 = arith.constant 0 : index
    %c0_8 = arith.constant 0 : index
    %9 = vector.load %arg3[%c0_7, %c0_8] : memref<2x128xbf16, #tpu.memory_space<vmem>>, vector<2x128xbf16>
    %10 = arith.truncf %7 : vector<128x128xf32> to vector<128x128xbf16>
    %cst_9 = arith.constant dense<0.000000e+00> : vector<2x128xf32>
    %11 = tpu.matmul %9, %10, %cst_9 {dimension_numbers = #tpu.dot_dimension_numbers<[1], [0], [0], [1], [0, 0, 1, 1], [], []>} : vector<2x128xbf16>, vector<128x128xbf16>, vector<2x128xf32> -> vector<2x128xf32>
    %12 = arith.addf %8, %11 : vector<2x128xf32>
    %c0_10 = arith.constant 0 : index
    %c0_11 = arith.constant 0 : index
    %13 = vector.load %arg7[%c0_10, %c0_11] : memref<2x128xf32, #tpu.memory_space<vmem>>, vector<2x128xf32>
    tpu.vector_store %arg7[%c0_10, %c0_11], %12 {strides = array<i32>} : memref<2x128xf32, #tpu.memory_space<vmem>>, vector<2x128xf32>,
    %c3_i32 = arith.constant 3 : i32
    %14 = arith.cmpi eq, %arg0, %c3_i32 : i32
    %15 = arith.extui %14 : i1 to i32
    %c0_i32_12 = arith.constant 0 : i32
    %16 = arith.cmpi ne, %15, %c0_i32_12 : i32
    scf.if %16 {
      %c0_13 = arith.constant 0 : index
      %c0_14 = arith.constant 0 : index
      %17 = vector.load %arg5[%c0_13, %c0_14] : memref<2x128xf32, #tpu.memory_space<vmem>>, vector<1x128xf32>
      %c1 = arith.constant 1 : index
      %c0_15 = arith.constant 0 : index
      %18 = vector.load %arg5[%c1, %c0_15] : memref<2x128xf32, #tpu.memory_space<vmem>>, vector<1x128xf32>
      %c0_16 = arith.constant 0 : index
      %c0_17 = arith.constant 0 : index
      %19 = vector.load %arg7[%c0_16, %c0_17] : memref<2x128xf32, #tpu.memory_space<vmem>>, vector<2x128xf32>
      %20 = arith.truncf %19 : vector<2x128xf32> to vector<2x128xbf16>
      %c0_18 = arith.constant 0 : index
      %c0_19 = arith.constant 0 : index
      %21 = vector.load %arg4[%c0_18, %c0_19] : memref<128x128xbf16, #tpu.memory_space<vmem>>, vector<128x128xbf16>
      %cst_20 = arith.constant dense<0.000000e+00> : vector<2x128xf32>
      %22 = tpu.matmul %20, %21, %cst_20 {dimension_numbers = #tpu.dot_dimension_numbers<[1], [0], [0], [1], [0, 0, 1, 1], [], []>} : vector<2x128xbf16>, vector<128x128xbf16>, vector<2x128xf32> -> vector<2x128xf32>
      %cst_21 = arith.constant dense<0.000000e+00> : vector<128xf32>
      %23 = vector.multi_reduction <add>, %22, %cst_21 [0] : vector<2x128xf32> to vector<128xf32>
      %24 = vector.shape_cast %23 : vector<128xf32> to vector<1x128xf32>
      %cst_22 = arith.constant 2.000000e+00 : f32
      %25 = vector.broadcast %cst_22 : f32 to vector<1x128xf32>
      %26 = arith.divf %24, %25 : vector<1x128xf32>
      %27 = vector.broadcast %26 : vector<1x128xf32> to vector<2x128xf32>
      %28 = arith.subf %22, %27 : vector<2x128xf32>
      %29 = arith.mulf %28, %28 : vector<2x128xf32>
      %cst_23 = arith.constant dense<0.000000e+00> : vector<128xf32>
      %30 = vector.multi_reduction <add>, %29, %cst_23 [0] : vector<2x128xf32> to vector<128xf32>
      %31 = vector.shape_cast %30 : vector<128xf32> to vector<1x128xf32>
      %cst_24 = arith.constant 2.000000e+00 : f32
      %32 = vector.broadcast %cst_24 : f32 to vector<1x128xf32>
      %33 = arith.divf %31, %32 : vector<1x128xf32>
      %cst_25 = arith.constant 9.99999974E-6 : f32
      %34 = vector.broadcast %cst_25 : f32 to vector<1x128xf32>
      %35 = arith.addf %33, %34 : vector<1x128xf32>
      %36 = math.rsqrt %35 : vector<1x128xf32>
      %37 = arith.mulf %17, %36 : vector<1x128xf32>
      %38 = vector.broadcast %26 : vector<1x128xf32> to vector<2x128xf32>
      %39 = arith.subf %22, %38 : vector<2x128xf32>
      %40 = vector.broadcast %37 : vector<1x128xf32> to vector<2x128xf32>
      %41 = arith.mulf %39, %40 : vector<2x128xf32>
      %42 = vector.broadcast %18 : vector<1x128xf32> to vector<2x128xf32>
      %43 = arith.addf %41, %42 : vector<2x128xf32>
      %c0_26 = arith.constant 0 : index
      %c0_27 = arith.constant 0 : index
      %44 = vector.load %arg6[%c0_26, %c0_27] : memref<2x128xf32, #tpu.memory_space<vmem>>, vector<2x128xf32>
      tpu.vector_store %arg6[%c0_26, %c0_27], %43 {strides = array<i32>} : memref<2x128xf32, #tpu.memory_space<vmem>>, vector<2x128xf32>,
    } else {
    }
    return
  }
  func.func @transform_0(%arg0: i32) -> (i32, i32) {
    %c0_i32 = arith.constant 0 : i32
    %c0_i32_0 = arith.constant 0 : i32
    return %arg0, %c0_i32 : i32, i32
  }
  func.func @transform_1(%arg0: i32) -> (i32, i32) {
    %c0_i32 = arith.constant 0 : i32
    %c0_i32_0 = arith.constant 0 : i32
    %c0_i32_1 = arith.constant 0 : i32
    return %c0_i32, %c0_i32_0 : i32, i32
  }
  func.func @transform_2(%arg0: i32) -> (i32, i32) {
    %c0_i32 = arith.constant 0 : i32
    %c0_i32_0 = arith.constant 0 : i32
    return %c0_i32, %arg0 : i32, i32
  }
  func.func @transform_3(%arg0: i32) -> (i32, i32) {
    %c0_i32 = arith.constant 0 : i32
    %c0_i32_0 = arith.constant 0 : i32
    %c0_i32_1 = arith.constant 0 : i32
    return %c0_i32, %c0_i32_0 : i32, i32
  }
  func.func @transform_4(%arg0: i32) -> (i32, i32) {
    %c0_i32 = arith.constant 0 : i32
    %c0_i32_0 = arith.constant 0 : i32
    %c0_i32_1 = arith.constant 0 : i32
    return %c0_i32, %c0_i32_0 : i32, i32
  }
  func.func @transform_5(%arg0: i32) -> (i32, i32) {
    %c0_i32 = arith.constant 0 : i32
    %c0_i32_0 = arith.constant 0 : i32
    %c0_i32_1 = arith.constant 0 : i32
    return %c0_i32, %c0_i32_0 : i32, i32
  }
}

</mosaic_0001>

<llo_original>
// kernel: encoder_cnn_forward.1
$region0: #{encoder_cnn_forward.1}
  #allocation0 [shape = 'u32[]', space=smem, size = 0x4, offset = 0x4, fixed_abs, tag = 'smem constant byte address 0x4 - core index']
  #allocation1 [shape = 'u32[144,128]{1,0:T(1,128)}', space=vmem, size = 0x12000, scoped, tag = 'internal scratch']
  #allocation2 [shape = 'f32[2,128]{1,0:T(2,128)}', space=vmem, size = 0x400, scoped, tag = 'scratch operand']
  %s0 = inlined_call_operand.vmem [shape: bf16[512,128], index: 0, kind: input, shape index: {}]
  %s1 = inlined_call_operand.vmem [shape: bf16[128,128], index: 1, kind: input, shape index: {}]
  %s2 = inlined_call_operand.vmem [shape: bf16[2,512], index: 2, kind: input, shape index: {}]
  %s3 = inlined_call_operand.vmem [shape: bf16[128,128], index: 3, kind: input, shape index: {}]
  %s4 = inlined_call_operand.vmem [shape: f32[2,128], index: 4, kind: input, shape index: {}]
  %s5 = inlined_call_operand.hbm [shape: f32[2,128], index: 5, kind: output, shape index: {}]
  %s6 = sld [smem:[#allocation0]]
  $region61: #{encoder_cnn_forward.1} parent=0
    _
  %s8 = ssub.s32 1, %s6
  %s9 = scalar_select 0, %s8, %s6
  $region1: #{encoder_cnn_forward.1} parent=0
    #allocation3 [shape = 'u8[1024]{0}', space=vmem, size = 0x400, scoped, tag = 'output window, operand 0, single buffered']
    #allocation4 [shape = 's32[2]{0}', space=sflag, size = 0x8, scoped, tag = 'scoped memory for encoder_cnn_forward.1']
    %10 = vsyncpa [#allocation4], 0
    loop: start=0, step=1, limit=6
    $region2: #{encoder_cnn_forward.1} parent=1 // loop_pre_header
      _
    $region3: #{encoder_cnn_forward.1} parent=1 // loop_header
      %s12 = sphi 0, %s16
      %p13 = scmp.ge.s32.totalorder %s12, 6
      %s22 = sphi 0, %s24
      %s25 = sphi 0, %s22
      %s26 = sphi 0, %s25
      %s42 = sphi 0, %s26
      %s46 = sphi 0, %s46
      %s48 = sphi 0, %s46
      %s49 = sphi 0, %s48
      %s63 = sphi 0, %s49
      %s69 = sphi 0, %s71
      %s72 = sphi 0, %s69
      %s73 = sphi 0, %s72
      %s89 = sphi 0, %s73
      %s93 = sphi 0, %s93
      %s95 = sphi 0, %s93
      %s96 = sphi 0, %s95
      %s110 = sphi 0, %s96
      %s114 = sphi 0, %s114
      %s116 = sphi 0, %s114
      %s117 = sphi 0, %s116
      %s131 = sphi 0, %s117
      %s135 = sphi 0, %s135
      %s137 = sphi 0, %s135
      %s138 = sphi 0, %s137
      %s152 = sphi 0, %s138
    $region4: #{encoder_cnn_forward.1} parent=1 // loop_header_branch
      %15 = sbr.rel (%p13) target = $region8
    $region5: #{encoder_cnn_forward.1} parent=1 // loop_body
      %s17 = ssub.s32 %s12, 1
      %s18 = ssub.s32 %s12, 2
      %s19 = sadd.s32 %s12, 1
      %s20 = ssub.s32 %s12, %s19
      %p21 = scmp.eq.s32.totalorder %s20, 0
      %s23 = sadd.s32 %s22, 1
      %s24 = scalar_select %p21, %s22, %s23
      %p27 = pneg %p21
      %p28 = scmp.eq.s32.totalorder %s12, 3
      %p29 = por %p27, %p28
      %p30 = scmp.ne.s32.totalorder %s22, %s25
      %p31 = scmp.eq.s32.totalorder %s12, 0
      %p32 = por %p30, %p31
      %p33 = scmp.ne.s32.totalorder %s22, %s25
      %p34 = scmp.eq.s32.totalorder %s17, 3
      %p35 = por %p33, %p34
      %p36 = scmp.ne.s32.totalorder %s25, %s26
      %p37 = scmp.eq.s32.totalorder %s17, 0
      %p38 = por %p36, %p37
      %p39 = scmp.ne.s32.totalorder %s25, %s26
      %p40 = scmp.eq.s32.totalorder %s18, 3
      %p41 = por %p39, %p40
      %p43 = scmp.ne.s32.totalorder %s26, %s42
      %p44 = scmp.eq.s32.totalorder %s18, 0
      %p45 = por %p43, %p44
      %s47 = sadd.s32 %s46, 1
      %p50 = scmp.eq.s32.totalorder %s12, 3
      %p51 = scmp.ne.s32.totalorder %s46, %s48
      %p52 = scmp.eq.s32.totalorder %s12, 0
      %p53 = por %p51, %p52
      %p54 = scmp.ne.s32.totalorder %s46, %s48
      %p55 = scmp.eq.s32.totalorder %s17, 3
      %p56 = por %p54, %p55
      %p57 = scmp.ne.s32.totalorder %s48, %s49
      %p58 = scmp.eq.s32.totalorder %s17, 0
      %p59 = por %p57, %p58
      %p60 = scmp.ne.s32.totalorder %s48, %s49
      %p61 = scmp.eq.s32.totalorder %s18, 3
      %p62 = por %p60, %p61
      %p64 = scmp.ne.s32.totalorder %s49, %s63
      %p65 = scmp.eq.s32.totalorder %s18, 0
      %p66 = por %p64, %p65
      %s67 = ssub.s32 %s12, %s19
      %p68 = scmp.eq.s32.totalorder %s67, 0
      %s70 = sadd.s32 %s69, 1
      %s71 = scalar_select %p68, %s69, %s70
      %p74 = pneg %p68
      %p75 = scmp.eq.s32.totalorder %s12, 3
      %p76 = por %p74, %p75
      %p77 = scmp.ne.s32.totalorder %s69, %s72
      %p78 = scmp.eq.s32.totalorder %s12, 0
      %p79 = por %p77, %p78
      %p80 = scmp.ne.s32.totalorder %s69, %s72
      %p81 = scmp.eq.s32.totalorder %s17, 3
      %p82 = por %p80, %p81
      %p83 = scmp.ne.s32.totalorder %s72, %s73
      %p84 = scmp.eq.s32.totalorder %s17, 0
      %p85 = por %p83, %p84
      %p86 = scmp.ne.s32.totalorder %s72, %s73
      %p87 = scmp.eq.s32.totalorder %s18, 3
      %p88 = por %p86, %p87
      %p90 = scmp.ne.s32.totalorder %s73, %s89
      %p91 = scmp.eq.s32.totalorder %s18, 0
      %p92 = por %p90, %p91
      %s94 = sadd.s32 %s93, 1
      %p97 = scmp.eq.s32.totalorder %s12, 3
      %p98 = scmp.ne.s32.totalorder %s93, %s95
      %p99 = scmp.eq.s32.totalorder %s12, 0
      %p100 = por %p98, %p99
      %p101 = scmp.ne.s32.totalorder %s93, %s95
      %p102 = scmp.eq.s32.totalorder %s17, 3
      %p103 = por %p101, %p102
      %p104 = scmp.ne.s32.totalorder %s95, %s96
      %p105 = scmp.eq.s32.totalorder %s17, 0
      %p106 = por %p104, %p105
      %p107 = scmp.ne.s32.totalorder %s95, %s96
      %p108 = scmp.eq.s32.totalorder %s18, 3
      %p109 = por %p107, %p108
      %p111 = scmp.ne.s32.totalorder %s96, %s110
      %p112 = scmp.eq.s32.totalorder %s18, 0
      %p113 = por %p111, %p112
      %s115 = sadd.s32 %s114, 1
      %p118 = scmp.eq.s32.totalorder %s12, 3
      %p119 = scmp.ne.s32.totalorder %s114, %s116
      %p120 = scmp.eq.s32.totalorder %s12, 0
      %p121 = por %p119, %p120
      %p122 = scmp.ne.s32.totalorder %s114, %s116
      %p123 = scmp.eq.s32.totalorder %s17, 3
      %p124 = por %p122, %p123
      %p125 = scmp.ne.s32.totalorder %s116, %s117
      %p126 = scmp.eq.s32.totalorder %s17, 0
      %p127 = por %p125, %p126
      %p128 = scmp.ne.s32.totalorder %s116, %s117
      %p129 = scmp.eq.s32.totalorder %s18, 3
      %p130 = por %p128, %p129
      %p132 = scmp.ne.s32.totalorder %s117, %s131
      %p133 = scmp.eq.s32.totalorder %s18, 0
      %p134 = por %p132, %p133
      %s136 = sadd.s32 %s135, 1
      %p139 = scmp.eq.s32.totalorder %s12, 3
      %p140 = scmp.ne.s32.totalorder %s135, %s137
      %p141 = scmp.eq.s32.totalorder %s12, 0
      %p142 = por %p140, %p141
      %p143 = scmp.ne.s32.totalorder %s135, %s137
      %p144 = scmp.eq.s32.totalorder %s17, 3
      %p145 = por %p143, %p144
      %p146 = scmp.ne.s32.totalorder %s137, %s138
      %p147 = scmp.eq.s32.totalorder %s17, 0
      %p148 = por %p146, %p147
      %p149 = scmp.ne.s32.totalorder %s137, %s138
      %p150 = scmp.eq.s32.totalorder %s18, 3
      %p151 = por %p149, %p150
      %p153 = scmp.ne.s32.totalorder %s138, %s152
      %p154 = scmp.eq.s32.totalorder %s18, 0
      %p155 = por %p153, %p154
      %p156 = scmp.le.s32.totalorder 1, %s12
      %p157 = scmp.lt.s32.totalorder %s12, 5
      %p158 = pnand %p156, %p157
      %p159 = pneg %p158
      // Predicated region
      $region9: #{encoder_cnn_forward.1} parent=5 // pred_check
        _
      $region10: #{encoder_cnn_forward.1} parent=5 // pred_check_branch
        %161 = sbr.rel (%p158) target = $region12
      $region11: #{encoder_cnn_forward.1} parent=5 // pred_region
        %s162 = ssub.s32 %s12, 1
        // Predicated region
        $region13: #{encoder_cnn_forward.1} parent=11 // pred_check
          %p163 = pneg %p59
        $region14: #{encoder_cnn_forward.1} parent=11 // pred_check_branch
          %165 = sbr.rel (%p163) target = $region16
        $region15: #{encoder_cnn_forward.1} parent=11 // pred_region
          _
        $region16: #{encoder_cnn_forward.1} parent=11 // pred_fallthru
          _
        // Predicated region
        $region17: #{encoder_cnn_forward.1} parent=11 // pred_check
          %p166 = pneg %p106
        $region18: #{encoder_cnn_forward.1} parent=11 // pred_check_branch
          %168 = sbr.rel (%p166) target = $region20
        $region19: #{encoder_cnn_forward.1} parent=11 // pred_region
          _
        $region20: #{encoder_cnn_forward.1} parent=11 // pred_fallthru
          _
        // Predicated region
        $region21: #{encoder_cnn_forward.1} parent=11 // pred_check
          %p169 = pneg %p127
        $region22: #{encoder_cnn_forward.1} parent=11 // pred_check_branch
          %171 = sbr.rel (%p169) target = $region24
        $region23: #{encoder_cnn_forward.1} parent=11 // pred_region
          _
        $region24: #{encoder_cnn_forward.1} parent=11 // pred_fallthru
          _
      $region12: #{encoder_cnn_forward.1} parent=5 // pred_fallthru
        _
      %p172 = scmp.lt.s32.totalorder %s12, 4
      // Predicated region
      $region25: #{encoder_cnn_forward.1} parent=5 // pred_check
        %p173 = pneg %p172
      $region26: #{encoder_cnn_forward.1} parent=5 // pred_check_branch
        %175 = sbr.rel (%p173) target = $region28
      $region27: #{encoder_cnn_forward.1} parent=5 // pred_region
        // Predicated region
        $region29: #{encoder_cnn_forward.1} parent=27 // pred_check
          %p176 = pneg %p32
        $region30: #{encoder_cnn_forward.1} parent=27 // pred_check_branch
          %178 = sbr.rel (%p176) target = $region32
        $region31: #{encoder_cnn_forward.1} parent=27 // pred_region
          %s179 = smul.u32 16, %s12
          %p180 = scmp.lt.s32.totalorder %s179, 63
          %s181 = scalar_select %p180, %s179, 63
          %s182 = smul.addr %s181, 4
          %s183 = scalar_lea.vmem %s0, %s182
          %s184 = smul.u32 16, %s12
        $region32: #{encoder_cnn_forward.1} parent=27 // pred_fallthru
          _
        // Predicated region
        $region33: #{encoder_cnn_forward.1} parent=27 // pred_check
          %p185 = pneg %p79
        $region34: #{encoder_cnn_forward.1} parent=27 // pred_check_branch
          %187 = sbr.rel (%p185) target = $region36
        $region35: #{encoder_cnn_forward.1} parent=27 // pred_region
          %p188 = scmp.lt.s32.totalorder %s12, 3
          %s189 = scalar_select %p188, %s12, 3
          %s190 = scalar_lea.vmem %s2, %s189
        $region36: #{encoder_cnn_forward.1} parent=27 // pred_fallthru
          _
      $region28: #{encoder_cnn_forward.1} parent=5 // pred_fallthru
        _
      %p191 = scmp.le.s32.totalorder 1, %s12
      %p192 = scmp.lt.s32.totalorder %s12, 5
      %p193 = pnand %p191, %p192
      %p194 = pneg %p193
      // Predicated region
      $region37: #{encoder_cnn_forward.1} parent=5 // pred_check
        _
      $region38: #{encoder_cnn_forward.1} parent=5 // pred_check_branch
        %196 = sbr.rel (%p193) target = $region40
      $region39: #{encoder_cnn_forward.1} parent=5 // pred_region
        %s197 = ssub.s32 %s12, 1
        %s198 = smul.u32 16, %s17
        %p199 = scmp.lt.s32.totalorder %s198, 63
        %s200 = scalar_select %p199, %s198, 63
        %s201 = smul.addr %s200, 4
        %s202 = scalar_lea.vmem %s0, %s201
        %p203 = pneg %p38
        %p204 = pneg %p35
        %p205 = pneg %p59
        %p206 = pneg %p56
        %p207 = scmp.lt.s32.totalorder %s17, 3
        %s208 = scalar_select %p207, %s17, 3
        %s209 = scalar_lea.vmem %s2, %s208
        %p210 = pneg %p85
        %p211 = pneg %p82
        %p212 = pneg %p106
        %p213 = pneg %p103
        %p214 = pneg %p127
        %p215 = pneg %p124
        %p216 = pneg %p148
        %p217 = pneg %p145
        %s218 = smul.u32 16, %s17
        %p219 = scmp.lt.s32.totalorder %s218, 63
        %s220 = scalar_select %p219, %s218, 63
        %s221 = smul.addr %s220, 4
        %s222 = scalar_lea.vmem %s0, %s221
        %s223 = smul.u32 16, %s17
        %p224 = scmp.lt.s32.totalorder %s17, 3
        %s225 = scalar_select %p224, %s17, 3
        %s226 = scalar_lea.vmem %s2, %s225
        %p228 = scmp.eq.s32.totalorder %s17, 0
        // Predicated region
        $region41: #{encoder_cnn_forward.1} parent=39 // pred_check
          %p229 = pneg %p228
        $region42: #{encoder_cnn_forward.1} parent=39 // pred_check_branch
          %231 = sbr.rel (%p229) target = $region44
        $region43: #{encoder_cnn_forward.1} parent=39 // pred_region
          %232 = vst [vmem:[#allocation2] sm:$0x3] 0.0
        $region44: #{encoder_cnn_forward.1} parent=39 // pred_fallthru
          _
        %v233 = vld [vmem:[%s222] sm:$0xf]
        %v234 = vld [vmem:[%s222 + $0x4] sm:$0xf]
        %v235 = vld [vmem:[%s222 + $0x8] sm:$0xf]
        %v236 = vld [vmem:[%s222 + $0xc] sm:$0xf]
        %v237 = vld [vmem:[%s222 + $0x10] sm:$0xf]
        %v238 = vld [vmem:[%s222 + $0x14] sm:$0xf]
        %v239 = vld [vmem:[%s222 + $0x18] sm:$0xf]
        %v240 = vld [vmem:[%s222 + $0x1c] sm:$0xf]
        %v241 = vld [vmem:[%s222 + $0x20] sm:$0xf]
        %v242 = vld [vmem:[%s222 + $0x24] sm:$0xf]
        %v243 = vld [vmem:[%s222 + $0x28] sm:$0xf]
        %v244 = vld [vmem:[%s222 + $0x2c] sm:$0xf]
        %v245 = vld [vmem:[%s222 + $0x30] sm:$0xf]
        %v246 = vld [vmem:[%s222 + $0x34] sm:$0xf]
        %v247 = vld [vmem:[%s222 + $0x38] sm:$0xf]
        %v248 = vld [vmem:[%s222 + $0x3c] sm:$0xf]
        %v249 = vld [vmem:[%s1] sm:$0xf]
        %v250 = vld [vmem:[%s1 + $0x4] sm:$0xf]
        %v251 = vld [vmem:[%s1 + $0x8] sm:$0xf]
        %v252 = vld [vmem:[%s1 + $0xc] sm:$0xf]
        %v253 = vld [vmem:[%s1 + $0x10] sm:$0xf]
        %v254 = vld [vmem:[%s1 + $0x14] sm:$0xf]
        %v255 = vld [vmem:[%s1 + $0x18] sm:$0xf]
        %v256 = vld [vmem:[%s1 + $0x1c] sm:$0xf]
        %v257 = vld [vmem:[%s1 + $0x20] sm:$0xf]
        %v258 = vld [vmem:[%s1 + $0x24] sm:$0xf]
        %v259 = vld [vmem:[%s1 + $0x28] sm:$0xf]
        %v260 = vld [vmem:[%s1 + $0x2c] sm:$0xf]
        %v261 = vld [vmem:[%s1 + $0x30] sm:$0xf]
        %v262 = vld [vmem:[%s1 + $0x34] sm:$0xf]
        %v263 = vld [vmem:[%s1 + $0x38] sm:$0xf]
        %v264 = vld [vmem:[%s1 + $0x3c] sm:$0xf]
        %v281 = vunpack.c.l.b16 %v233
        %v282 = vunpack.c.l.b16 %v234
        %v283 = vunpack.c.l.b16 %v235
        %v284 = vunpack.c.l.b16 %v236
        %v285 = vunpack.c.l.b16 %v237
        %v286 = vunpack.c.l.b16 %v238
        %v287 = vunpack.c.l.b16 %v239
        %v288 = vunpack.c.l.b16 %v240
        %v289 = vunpack.c.l.b16 %v241
        %v290 = vunpack.c.l.b16 %v242
        %v291 = vunpack.c.l.b16 %v243
        %v292 = vunpack.c.l.b16 %v244
        %v293 = vunpack.c.l.b16 %v245
        %v294 = vunpack.c.l.b16 %v246
        %v295 = vunpack.c.l.b16 %v247
        %v296 = vunpack.c.l.b16 %v248
        %v297 = vpack.c.b16 %v282, %v281
        %v298 = vpack.c.b16 %v284, %v283
        %v299 = vpack.c.b16 %v286, %v285
        %v300 = vpack.c.b16 %v288, %v287
        %v301 = vpack.c.b16 %v290, %v289
        %v302 = vpack.c.b16 %v292, %v291
        %v303 = vpack.c.b16 %v294, %v293
        %v304 = vpack.c.b16 %v296, %v295
        %v329 = vunpack.c.l.b16 %v249
        %v330 = vunpack.c.l.b16 %v250
        %v331 = vunpack.c.l.b16 %v251
        %v332 = vunpack.c.l.b16 %v252
        %v333 = vunpack.c.l.b16 %v253
        %v334 = vunpack.c.l.b16 %v254
        %v335 = vunpack.c.l.b16 %v255
        %v336 = vunpack.c.l.b16 %v256
        %v337 = vunpack.c.l.b16 %v257
        %v338 = vunpack.c.l.b16 %v258
        %v339 = vunpack.c.l.b16 %v259
        %v340 = vunpack.c.l.b16 %v260
        %v341 = vunpack.c.l.b16 %v261
        %v342 = vunpack.c.l.b16 %v262
        %v343 = vunpack.c.l.b16 %v263
        %v344 = vunpack.c.l.b16 %v264
        %v345 = vpack.c.b16 %v330, %v329
        %v346 = vpack.c.b16 %v332, %v331
        %v347 = vpack.c.b16 %v334, %v333
        %v348 = vpack.c.b16 %v336, %v335
        %v349 = vpack.c.b16 %v338, %v337
        %v350 = vpack.c.b16 %v340, %v339
        %v351 = vpack.c.b16 %v342, %v341
        %v352 = vpack.c.b16 %v344, %v343
        %361 = vmatprep.subr.bf16.mxu0 0
        %362 = vmatpush1.bf16.msra.mxu0 %v352
        %363 = vmatprep.subr.bf16.mxu0 0
        %364 = vmatpush1.bf16.msra.mxu0 %v351
        %365 = vmatprep.subr.bf16.mxu0 0
        %366 = vmatpush1.bf16.msra.mxu0 %v350
        %367 = vmatprep.subr.bf16.mxu0 0
        %368 = vmatpush1.bf16.msra.mxu0 %v349
        %369 = vmatprep.subr.bf16.mxu0 0
        %370 = vmatpush1.bf16.msra.mxu0 %v348
        %371 = vmatprep.subr.bf16.mxu0 0
        %372 = vmatpush1.bf16.msra.mxu0 %v347
        %373 = vmatprep.subr.bf16.mxu0 0
        %374 = vmatpush1.bf16.msra.mxu0 %v346
        %375 = vmatprep.subr.bf16.mxu0 0
        %376 = vmatpush1.bf16.msra.mxu0 %v345
        %377 = vmatprep.subr.bf16.mxu0 0
        %378 = vmatpush2.bf16.msra.mxu0 0
        %379 = vmatprep.subr.bf16.mxu0 0
        %380 = vmatpush2.bf16.msra.mxu0 0
        %381 = vmatprep.subr.bf16.mxu0 0
        %382 = vmatpush2.bf16.msra.mxu0 0
        %383 = vmatprep.subr.bf16.mxu0 0
        %384 = vmatpush2.bf16.msra.mxu0 0
        %385 = vmatprep.subr.bf16.mxu0 0
        %386 = vmatpush2.bf16.msra.mxu0 0
        %387 = vmatprep.subr.bf16.mxu0 0
        %388 = vmatpush2.bf16.msra.mxu0 0
        %389 = vmatprep.subr.bf16.mxu0 0
        %390 = vmatpush2.bf16.msra.mxu0 0
        %391 = vmatprep.subr.bf16.mxu0 0
        %392 = vmatpush2.bf16.msra.mxu0 0
        %393 = vmatprep.mubr.bf16.mxu0 0
        %394 = vmatmul.mubr.bf16.gmra.mxu0 %v297
        %v395 = vpop.f32.mrf.mxu0
        %v396 = vadd.f32 0.0, %v395
        %v397 = vpop.f32.mrf.mxu0
        %v398 = vpop.f32.mrf.mxu0
        %v399 = vadd.f32 0.0, %v398
        %v400 = vpop.f32.mrf.mxu0
        %401 = vmatprep.mubr.bf16.mxu0 0
        %402 = vmatmul.mubr.bf16.gmra.mxu0 %v298
        %v403 = vpop.f32.mrf.mxu0
        %v404 = vadd.f32 0.0, %v403
        %v405 = vpop.f32.mrf.mxu0
        %v406 = vpop.f32.mrf.mxu0
        %v407 = vadd.f32 0.0, %v406
        %v408 = vpop.f32.mrf.mxu0
        %409 = vmatprep.mubr.bf16.mxu0 0
        %410 = vmatmul.mubr.bf16.gmra.mxu0 %v299
        %v411 = vpop.f32.mrf.mxu0
        %v412 = vadd.f32 0.0, %v411
        %v413 = vpop.f32.mrf.mxu0
        %v414 = vpop.f32.mrf.mxu0
        %v415 = vadd.f32 0.0, %v414
        %v416 = vpop.f32.mrf.mxu0
        %417 = vmatprep.mubr.bf16.mxu0 0
        %418 = vmatmul.mubr.bf16.gmra.mxu0 %v300
        %v419 = vpop.f32.mrf.mxu0
        %v420 = vadd.f32 0.0, %v419
        %v421 = vpop.f32.mrf.mxu0
        %v422 = vpop.f32.mrf.mxu0
        %v423 = vadd.f32 0.0, %v422
        %v424 = vpop.f32.mrf.mxu0
        %425 = vmatprep.mubr.bf16.mxu0 0
        %426 = vmatmul.mubr.bf16.gmra.mxu0 %v301
        %v427 = vpop.f32.mrf.mxu0
        %v428 = vadd.f32 0.0, %v427
        %v429 = vpop.f32.mrf.mxu0
        %v430 = vpop.f32.mrf.mxu0
        %v431 = vadd.f32 0.0, %v430
        %v432 = vpop.f32.mrf.mxu0
        %433 = vmatprep.mubr.bf16.mxu0 0
        %434 = vmatmul.mubr.bf16.gmra.mxu0 %v302
        %v435 = vpop.f32.mrf.mxu0
        %v436 = vadd.f32 0.0, %v435
        %v437 = vpop.f32.mrf.mxu0
        %v438 = vpop.f32.mrf.mxu0
        %v439 = vadd.f32 0.0, %v438
        %v440 = vpop.f32.mrf.mxu0
        %441 = vmatprep.mubr.bf16.mxu0 0
        %442 = vmatmul.mubr.bf16.gmra.mxu0 %v303
        %v443 = vpop.f32.mrf.mxu0
        %v444 = vadd.f32 0.0, %v443
        %v445 = vpop.f32.mrf.mxu0
        %v446 = vpop.f32.mrf.mxu0
        %v447 = vadd.f32 0.0, %v446
        %v448 = vpop.f32.mrf.mxu0
        %449 = vmatprep.mubr.bf16.mxu0 0
        %450 = vmatmul.mubr.bf16.gmra.mxu0 %v304
        %v451 = vpop.f32.mrf.mxu0
        %v452 = vadd.f32 0.0, %v451
        %v453 = vpop.f32.mrf.mxu0
        %v454 = vpop.f32.mrf.mxu0
        %v455 = vadd.f32 0.0, %v454
        %v456 = vpop.f32.mrf.mxu0
        %457 = vdwg.mxu0
        %v458 = vmax.f32 %v396, 0.0
        %v459 = vmax.f32 %v399, 0.0
        %v460 = vmax.f32 %v404, 0.0
        %v461 = vmax.f32 %v407, 0.0
        %v462 = vmax.f32 %v412, 0.0
        %v463 = vmax.f32 %v415, 0.0
        %v464 = vmax.f32 %v420, 0.0
        %v465 = vmax.f32 %v423, 0.0
        %v466 = vmax.f32 %v428, 0.0
        %v467 = vmax.f32 %v431, 0.0
        %v468 = vmax.f32 %v436, 0.0
        %v469 = vmax.f32 %v439, 0.0
        %v470 = vmax.f32 %v444, 0.0
        %v471 = vmax.f32 %v447, 0.0
        %v472 = vmax.f32 %v452, 0.0
        %v473 = vmax.f32 %v455, 0.0
        %v474 = vld [vmem:[#allocation2] sm:$0x3]
        %v475 = vld [vmem:[%s226] sm:$0x1]
        %v476 = vpack.c.bf16 %v459, %v458
        %v477 = vpack.c.bf16 %v461, %v460
        %v478 = vpack.c.bf16 %v463, %v462
        %v479 = vpack.c.bf16 %v465, %v464
        %v480 = vpack.c.bf16 %v467, %v466
        %v481 = vpack.c.bf16 %v469, %v468
        %v482 = vpack.c.bf16 %v471, %v470
        %v483 = vpack.c.bf16 %v473, %v472
        %484 = vmatprep.subr.bf16.mxu0 0
        %485 = vmatpush1.bf16.msra.mxu0 %v483
        %486 = vmatprep.subr.bf16.mxu0 0
        %487 = vmatpush1.bf16.msra.mxu0 %v482
        %488 = vmatprep.subr.bf16.mxu0 0
        %489 = vmatpush1.bf16.msra.mxu0 %v481
        %490 = vmatprep.subr.bf16.mxu0 0
        %491 = vmatpush1.bf16.msra.mxu0 %v480
        %492 = vmatprep.subr.bf16.mxu0 0
        %493 = vmatpush1.bf16.msra.mxu0 %v479
        %494 = vmatprep.subr.bf16.mxu0 0
        %495 = vmatpush1.bf16.msra.mxu0 %v478
        %496 = vmatprep.subr.bf16.mxu0 0
        %497 = vmatpush1.bf16.msra.mxu0 %v477
        %498 = vmatprep.subr.bf16.mxu0 0
        %499 = vmatpush1.bf16.msra.mxu0 %v476
        %500 = vmatprep.subr.bf16.mxu0 0
        %501 = vmatpush2.bf16.msra.mxu0 0
        %502 = vmatprep.subr.bf16.mxu0 0
        %503 = vmatpush2.bf16.msra.mxu0 0
        %504 = vmatprep.subr.bf16.mxu0 0
        %505 = vmatpush2.bf16.msra.mxu0 0
        %506 = vmatprep.subr.bf16.mxu0 0
        %507 = vmatpush2.bf16.msra.mxu0 0
        %508 = vmatprep.subr.bf16.mxu0 0
        %509 = vmatpush2.bf16.msra.mxu0 0
        %510 = vmatprep.subr.bf16.mxu0 0
        %511 = vmatpush2.bf16.msra.mxu0 0
        %512 = vmatprep.subr.bf16.mxu0 0
        %513 = vmatpush2.bf16.msra.mxu0 0
        %514 = vmatprep.subr.bf16.mxu0 0
        %515 = vmatpush2.bf16.msra.mxu0 0
        %516 = vmatprep.mubr.bf16.mxu0 0
        %517 = vmatmul.mubr.bf16.gmra.mxu0 %v475
        %v518 = vpop.f32.mrf.mxu0
        %v519 = vadd.f32 0.0, %v518
        %v520 = vpop.f32.mrf.mxu0
        %v521 = vpop.f32.mrf.mxu0
        %v522 = vpop.f32.mrf.mxu0
        %523 = vdwg.mxu0
        %v524 = vadd.f32 %v474, %v519
        %525 = vst [vmem:[#allocation2] sm:$0x3] %v524
        %p526 = scmp.eq.s32.totalorder %s17, 3
        // Predicated region
        $region45: #{encoder_cnn_forward.1} parent=39 // pred_check
          %p527 = pneg %p526
        $region46: #{encoder_cnn_forward.1} parent=39 // pred_check_branch
          %529 = sbr.rel (%p527) target = $region48
        $region47: #{encoder_cnn_forward.1} parent=39 // pred_region
          %v530 = vld [vmem:[%s4] sm:$0x1]
          %v531 = vld [vmem:[%s4 + $0x1] sm:$0x1]
          %v532 = vld [vmem:[#allocation2] sm:$0x3]
          %v533 = vpack.c.bf16 %v532, %v532
          %v534 = vld [vmem:[%s3] sm:$0xf]
          %v535 = vld [vmem:[%s3 + $0x4] sm:$0xf]
          %v536 = vld [vmem:[%s3 + $0x8] sm:$0xf]
          %v537 = vld [vmem:[%s3 + $0xc] sm:$0xf]
          %v538 = vld [vmem:[%s3 + $0x10] sm:$0xf]
          %v539 = vld [vmem:[%s3 + $0x14] sm:$0xf]
          %v540 = vld [vmem:[%s3 + $0x18] sm:$0xf]
          %v541 = vld [vmem:[%s3 + $0x1c] sm:$0xf]
          %v542 = vld [vmem:[%s3 + $0x20] sm:$0xf]
          %v543 = vld [vmem:[%s3 + $0x24] sm:$0xf]
          %v544 = vld [vmem:[%s3 + $0x28] sm:$0xf]
          %v545 = vld [vmem:[%s3 + $0x2c] sm:$0xf]
          %v546 = vld [vmem:[%s3 + $0x30] sm:$0xf]
          %v547 = vld [vmem:[%s3 + $0x34] sm:$0xf]
          %v548 = vld [vmem:[%s3 + $0x38] sm:$0xf]
          %v549 = vld [vmem:[%s3 + $0x3c] sm:$0xf]
          %v566 = vunpack.c.l.b16 %v534
          %v567 = vunpack.c.l.b16 %v535
          %v568 = vunpack.c.l.b16 %v536
          %v569 = vunpack.c.l.b16 %v537
          %v570 = vunpack.c.l.b16 %v538
          %v571 = vunpack.c.l.b16 %v539
          %v572 = vunpack.c.l.b16 %v540
          %v573 = vunpack.c.l.b16 %v541
          %v574 = vunpack.c.l.b16 %v542
          %v575 = vunpack.c.l.b16 %v543
          %v576 = vunpack.c.l.b16 %v544
          %v577 = vunpack.c.l.b16 %v545
          %v578 = vunpack.c.l.b16 %v546
          %v579 = vunpack.c.l.b16 %v547
          %v580 = vunpack.c.l.b16 %v548
          %v581 = vunpack.c.l.b16 %v549
          %v582 = vpack.c.b16 %v567, %v566
          %v583 = vpack.c.b16 %v569, %v568
          %v584 = vpack.c.b16 %v571, %v570
          %v585 = vpack.c.b16 %v573, %v572
          %v586 = vpack.c.b16 %v575, %v574
          %v587 = vpack.c.b16 %v577, %v576
          %v588 = vpack.c.b16 %v579, %v578
          %v589 = vpack.c.b16 %v581, %v580
          %598 = vmatprep.subr.bf16.mxu0 0
          %599 = vmatpush1.bf16.msra.mxu0 %v589
          %600 = vmatprep.subr.bf16.mxu0 0
          %601 = vmatpush1.bf16.msra.mxu0 %v588
          %602 = vmatprep.subr.bf16.mxu0 0
          %603 = vmatpush1.bf16.msra.mxu0 %v587
          %604 = vmatprep.subr.bf16.mxu0 0
          %605 = vmatpush1.bf16.msra.mxu0 %v586
          %606 = vmatprep.subr.bf16.mxu0 0
          %607 = vmatpush1.bf16.msra.mxu0 %v585
          %608 = vmatprep.subr.bf16.mxu0 0
          %609 = vmatpush1.bf16.msra.mxu0 %v584
          %610 = vmatprep.subr.bf16.mxu0 0
          %611 = vmatpush1.bf16.msra.mxu0 %v583
          %612 = vmatprep.subr.bf16.mxu0 0
          %613 = vmatpush1.bf16.msra.mxu0 %v582
          %614 = vmatprep.subr.bf16.mxu0 0
          %615 = vmatpush2.bf16.msra.mxu0 0
          %616 = vmatprep.subr.bf16.mxu0 0
          %617 = vmatpush2.bf16.msra.mxu0 0
          %618 = vmatprep.subr.bf16.mxu0 0
          %619 = vmatpush2.bf16.msra.mxu0 0
          %620 = vmatprep.subr.bf16.mxu0 0
          %621 = vmatpush2.bf16.msra.mxu0 0
          %622 = vmatprep.subr.bf16.mxu0 0
          %623 = vmatpush2.bf16.msra.mxu0 0
          %624 = vmatprep.subr.bf16.mxu0 0
          %625 = vmatpush2.bf16.msra.mxu0 0
          %626 = vmatprep.subr.bf16.mxu0 0
          %627 = vmatpush2.bf16.msra.mxu0 0
          %628 = vmatprep.subr.bf16.mxu0 0
          %629 = vmatpush2.bf16.msra.mxu0 0
          %630 = vmatprep.mubr.bf16.mxu0 0
          %631 = vmatmul.mubr.bf16.gmra.mxu0 %v533
          %v632 = vpop.f32.mrf.mxu0
          %v633 = vadd.f32 0.0, %v632
          %v634 = vpop.f32.mrf.mxu0
          %v635 = vpop.f32.mrf.mxu0
          %v636 = vpop.f32.mrf.mxu0
          %637 = vdwg.mxu0
          %vm638 = vcmask 1041408
          %v639 = vsel %vm638, %v633, 0.0
          %v640 = vrot.slane %v639, 4
          %v641 = vadd.f32 %v639, %v640
          %v642 = vrot.slane %v641, 2
          %v643 = vadd.f32 %v641, %v642
          %v644 = vrot.slane %v643, 1
          %v645 = vadd.f32 %v643, %v644
          %v646 = vrcp.pop 2.0
          %v647 = vmul.f32 %v645, %v646
          %v648 = vsub.f32 %v633, %v647
          %v649 = vmul.f32 %v648, %v648
          %v650 = vsel %vm638, %v649, 0.0
          %v651 = vrot.slane %v650, 4
          %v652 = vadd.f32 %v650, %v651
          %v653 = vrot.slane %v652, 2
          %v654 = vadd.f32 %v652, %v653
          %v655 = vrot.slane %v654, 1
          %v656 = vadd.f32 %v654, %v655
          %v657 = vmul.f32 %v656, %v646
          %v658 = vadd.f32 %v657, 1e-05
          %v659 = vrsqrt.pop %v658
          %v660 = vmul.f32 %v530, %v659
          %v661 = vlaneseq
          %v662 = vshrl.u32 %v661, 7
          %v663 = vsub.s32 0, %v662
          %v664 = vrot.slane %v660, %v663
          %v665 = vmul.f32 %v648, %v664
          %v666 = vlaneseq
          %v667 = vshrl.u32 %v666, 7
          %v668 = vsub.s32 0, %v667
          %v669 = vrot.slane %v531, %v668
          %v670 = vadd.f32 %v665, %v669
          %671 = vst [vmem:[#allocation3] sm:$0x3] %v670
        $region48: #{encoder_cnn_forward.1} parent=39 // pred_fallthru
          _
        // Predicated region
        $region49: #{encoder_cnn_forward.1} parent=39 // pred_check
          %p672 = pneg %p145
        $region50: #{encoder_cnn_forward.1} parent=39 // pred_check_branch
          %674 = sbr.rel (%p672) target = $region52
        $region51: #{encoder_cnn_forward.1} parent=39 // pred_region
          %s676 = ssub.s32 32, 32
          %677 = vsyncadd [#allocation4], %s676
          %s679 = sshll.u32 [#allocation3], 4
          %s680 = int_to_ptr.vmem [resolvable:$true] %s679
          %682 = dma.vmem_to_hbm [thread:$0]  %s680, 32, %s5, [#allocation4]
        $region52: #{encoder_cnn_forward.1} parent=39 // pred_fallthru
          _
        // Predicated region
        $region53: #{encoder_cnn_forward.1} parent=39 // pred_check
          %p683 = pneg %p145
        $region54: #{encoder_cnn_forward.1} parent=39 // pred_check_branch
          %685 = sbr.rel (%p683) target = $region56
        $region55: #{encoder_cnn_forward.1} parent=39 // pred_region
          %686 = dma.done [#allocation4], 32
        $region56: #{encoder_cnn_forward.1} parent=39 // pred_fallthru
          _
      $region40: #{encoder_cnn_forward.1} parent=5 // pred_fallthru
        _
      %p687 = scmp.le.s32.totalorder 2, %s12
      // Predicated region
      $region57: #{encoder_cnn_forward.1} parent=5 // pred_check
        %p688 = pneg %p687
      $region58: #{encoder_cnn_forward.1} parent=5 // pred_check_branch
        %690 = sbr.rel (%p688) target = $region60
      $region59: #{encoder_cnn_forward.1} parent=5 // pred_region
        %s691 = ssub.s32 %s12, 2
      $region60: #{encoder_cnn_forward.1} parent=5 // pred_fallthru
        _
    $region6: #{encoder_cnn_forward.1} parent=1 // loop_footer
      %s16 = sadd.s32 1, %s12
    $region7: #{encoder_cnn_forward.1} parent=1 // loop_footer_branch
      %11 = sbr.rel target = $region3
    $region8: #{encoder_cnn_forward.1} parent=1 // loop_exit
      _
    %692 = vsyncpa [#allocation4], 1
    %s693 = scalar_lea.sflag [#allocation4], 1
    %694 = vsyncpa %s693, 1

</llo_original>
